<compile_context>
chip_gen: v6e
topology: v6e:2x2x1
jax: 0.10.0
libtpu: 0.0.40
codegen_flags: <defaults>
</compile_context>

<pallas_src>
import functools

import jax
import jax.numpy as jnp
from jax.experimental import pallas as pl
from jax.experimental.pallas import tpu as pltpu


def _round_up(x, m):
    return (x + m - 1) // m * m


def dqn_cartpole_kernel(x_ref, w1_ref, b1_ref, w2_ref, b2_ref, out_ref):
    """Fused MLP: fc1 -> ReLU -> fc2 on one (padded, lane-dense) batch tile."""
    # fc1 (MXU matmul, f32 accumulation) + bias + ReLU in f32.
    h = jnp.dot(x_ref[...], w1_ref[...], preferred_element_type=jnp.float32)
    h = jnp.maximum(h + b1_ref[...], 0.0)
    # fc2 against the 128-lane padded W2 -> unmasked lane-dense store.
    # Cast h to the (possibly bf16) weight dtype for native MXU rate; keep
    # f32 accumulation and f32 bias add.
    o = jnp.dot(h.astype(w2_ref.dtype), w2_ref[...],
                preferred_element_type=jnp.float32)
    out_ref[...] = (o + b2_ref[...]).astype(out_ref.dtype)


def pad_dqn_params(w1, b1, w2, b2, matmul_dtype=jnp.float32):
    """Pad params to TPU-friendly shapes ONCE (cache; redo after optimizer steps).

    w1: (in_dim, hidden), b1: (1, hidden), w2: (hidden, n_actions),
    b2: (1, n_actions). Zero padding is mathematically inert.
    """
    in_dim, hid = w1.shape
    n_actions = w2.shape[1]
    in_pad = _round_up(max(in_dim, 8), 8)            # sublane-aligned K
    act_pad = _round_up(max(n_actions, 128), 128)    # lane-dense output slab

    w1p = jnp.zeros((in_pad, hid), matmul_dtype).at[:in_dim, :].set(
        w1.astype(matmul_dtype))
    b1p = b1.reshape(1, hid).astype(jnp.float32)
    w2p = jnp.zeros((hid, act_pad), matmul_dtype).at[:, :n_actions].set(
        w2.astype(matmul_dtype))
    b2p = jnp.zeros((1, act_pad), jnp.float32).at[:, :n_actions].set(
        b2.reshape(1, n_actions).astype(jnp.float32))
    return w1p, b1p, w2p, b2p


@functools.partial(
    jax.jit,
    static_argnames=("n_actions", "max_block_b", "min_grid_steps"))
def dqn_forward_cartpole(x, w1p, b1p, w2p, b2p, *, n_actions,
                         max_block_b=1024, min_grid_steps=1):
    """Pallas forward. x: (B, in_dim) f32 -> (B, n_actions) f32.

    Takes the *pre-padded* params from pad_dqn_params. The x pad, the
    pallas_call and the output slice are fused into this single jitted
    dispatch. Set min_grid_steps=2 for large batches on v7x (2 TCs).
    """
    B, in_dim = x.shape
    in_pad, hid = w1p.shape
    act_pad = w2p.shape[1]

    b_pad = _round_up(max(B, 8), 8)
    # Single big tile for small batches; cap at max_block_b and honour
    # min_grid_steps so v7x can shard a large batch across both cores.
    block_b = min(max_block_b, _round_up(pl.cdiv(b_pad, min_grid_steps), 8))
    b_pad = _round_up(b_pad, block_b)                # tile divides padded batch
    grid = (b_pad // block_b,)

    # Pad x inside the jit (fused with the kernel dispatch).
    xp = jnp.zeros((b_pad, in_pad), w1p.dtype).at[:B, :in_dim].set(
        x.astype(w1p.dtype))

    flops = 2 * b_pad * (in_pad * hid + hid * act_pad)
    bytes_accessed = (
        b_pad * in_pad * jnp.dtype(w1p.dtype).itemsize          # x
        + in_pad * hid * jnp.dtype(w1p.dtype).itemsize          # w1
        + hid * 4                                               # b1
        + hid * act_pad * jnp.dtype(w2p.dtype).itemsize         # w2
        + act_pad * 4                                           # b2
        + b_pad * act_pad * 4)                                  # out

    out = pl.pallas_call(
        dqn_cartpole_kernel,
        out_shape=jax.ShapeDtypeStruct((b_pad, act_pad), jnp.float32),
        grid_spec=pl.GridSpec(
            grid=grid,
            in_specs=[
                # batch tile of the (padded) observations
                pl.BlockSpec((block_b, in_pad), lambda i: (i, 0)),
                # weights / biases: grid-invariant, stay resident in VMEM
                pl.BlockSpec((in_pad, hid), lambda i: (0, 0)),
                pl.BlockSpec((1, hid), lambda i: (0, 0)),
                pl.BlockSpec((hid, act_pad), lambda i: (0, 0)),
                pl.BlockSpec((1, act_pad), lambda i: (0, 0)),
            ],
            out_specs=pl.BlockSpec((block_b, act_pad), lambda i: (i, 0)),
        ),
        compiler_params=pltpu.CompilerParams(
            dimension_semantics=("parallel",)),
        cost_estimate=pl.CostEstimate(
            flops=flops, transcendentals=0, bytes_accessed=bytes_accessed),
    )(xp, w1p, b1p, w2p, b2p)

    # Slice the padded slab back to the logical output (fused by jit).
    return out[:B, :n_actions]


def init_params(key, in_dim=4, hidden=256, n_actions=2):
    """Deterministic init mimicking PyTorch nn.Linear's uniform(-1/sqrt(fan_in), ...)."""
    k1, k2, k3, k4 = jax.random.split(key, 4)
    bound1 = 1.0 / jnp.sqrt(in_dim)
    bound2 = 1.0 / jnp.sqrt(hidden)
    w1 = jax.random.uniform(k1, (in_dim, hidden), jnp.float32, -bound1, bound1)
    b1 = jax.random.uniform(k2, (1, hidden), jnp.float32, -bound1, bound1)
    w2 = jax.random.uniform(k3, (hidden, n_actions), jnp.float32, -bound2, bound2)
    b2 = jax.random.uniform(k4, (1, n_actions), jnp.float32, -bound2, bound2)
    return w1, b1, w2, b2


if __name__ == "__main__":
    key = jax.random.PRNGKey(0)
    kx, kp = jax.random.split(key)

    # CartPole-v0: observation dim = 4, n_actions = 2, small batch
    B, IN_DIM, HIDDEN, N_ACTIONS = 16, 4, 256, 2
    x = jax.random.normal(kx, (B, IN_DIM), jnp.float32)
    w1, b1, w2, b2 = init_params(kp, IN_DIM, HIDDEN, N_ACTIONS)

    # Reference (plain JAX, unpadded params) to verify the fused kernel.
    ref = jnp.maximum(x @ w1 + b1, 0.0) @ w2 + b2

    # ---- f32 path (exact) -------------------------------------------------
    params_f32 = pad_dqn_params(w1, b1, w2, b2, jnp.float32)  # cached params
    out = dqn_forward_cartpole(x, *params_f32, n_actions=N_ACTIONS)
    out = jax.block_until_ready(out)
    assert out.shape == (B, N_ACTIONS)
    assert jnp.allclose(out, ref, atol=1e-5, rtol=1e-5)

    # ---- bf16 matmul-input path (v6e/v7x fast path; f32 accumulation) -----
    params_bf16 = pad_dqn_params(w1, b1, w2, b2, jnp.bfloat16)
    out_bf16 = jax.block_until_ready(
        dqn_forward_cartpole(x, *params_bf16, n_actions=N_ACTIONS))
    assert out_bf16.shape == (B, N_ACTIONS)
    assert jnp.allclose(out_bf16, ref, atol=5e-2, rtol=5e-2)

    print("KERNEL_OK")
</pallas_src>

<mosaic_0001>
module attributes {stable_mosaic.version = 11 : i64} {
  func.func @dqn_cartpole_kernel(%arg0: i32, %arg1: memref<16x8xf32, #tpu.memory_space<vmem>>, %arg2: memref<8x256xf32, #tpu.memory_space<vmem>>, %arg3: memref<1x256xf32, #tpu.memory_space<vmem>>, %arg4: memref<256x128xf32, #tpu.memory_space<vmem>>, %arg5: memref<1x128xf32, #tpu.memory_space<vmem>>, %arg6: memref<16x128xf32, #tpu.memory_space<vmem>>) attributes {dimension_semantics = [#tpu.dimension_semantics<parallel>], iteration_bounds = array<i64: 1>, scalar_prefetch = 0 : i64, scratch_operands = 0 : i64, tpu.core_type = #tpu.core_type<tc>, window_params = [{transform_indices = @transform_0, window_bounds = array<i64: 16, 8>}, {pipeline_mode = #tpu.pipeline_mode<synchronous>, transform_indices = @transform_1, window_bounds = array<i64: 8, 256>}, {pipeline_mode = #tpu.pipeline_mode<synchronous>, transform_indices = @transform_2, window_bounds = array<i64: 1, 256>}, {pipeline_mode = #tpu.pipeline_mode<synchronous>, transform_indices = @transform_3, window_bounds = array<i64: 256, 128>}, {pipeline_mode = #tpu.pipeline_mode<synchronous>, transform_indices = @transform_4, window_bounds = array<i64: 1, 128>}, {transform_indices = @transform_5, window_bounds = array<i64: 16, 128>}]} {
    %c0 = arith.constant 0 : index
    %c0_0 = arith.constant 0 : index
    %0 = vector.load %arg1[%c0, %c0_0] : memref<16x8xf32, #tpu.memory_space<vmem>>, vector<16x8xf32>
    %c0_1 = arith.constant 0 : index
    %c0_2 = arith.constant 0 : index
    %1 = vector.load %arg2[%c0_1, %c0_2] : memref<8x256xf32, #tpu.memory_space<vmem>>, vector<8x256xf32>
    %cst = arith.constant dense<0.000000e+00> : vector<16x256xf32>
    %2 = tpu.matmul %0, %1, %cst {dimension_numbers = #tpu.dot_dimension_numbers<[1], [0], [0], [1], [0, 0, 1, 1], [], []>} : vector<16x8xf32>, vector<8x256xf32>, vector<16x256xf32> -> vector<16x256xf32>
    %c0_3 = arith.constant 0 : index
    %c0_4 = arith.constant 0 : index
    %3 = vector.load %arg3[%c0_3, %c0_4] : memref<1x256xf32, #tpu.memory_space<vmem>>, vector<1x256xf32>
    %4 = vector.broadcast %3 : vector<1x256xf32> to vector<16x256xf32>
    %5 = arith.addf %2, %4 : vector<16x256xf32>
    %cst_5 = arith.constant 0.000000e+00 : f32
    %6 = vector.broadcast %cst_5 : f32 to vector<16x256xf32>
    %7 = arith.maximumf %5, %6 : vector<16x256xf32>
    %c0_6 = arith.constant 0 : index
    %c0_7 = arith.constant 0 : index
    %8 = vector.load %arg4[%c0_6, %c0_7] : memref<256x128xf32, #tpu.memory_space<vmem>>, vector<256x128xf32>
    %cst_8 = arith.constant dense<0.000000e+00> : vector<16x128xf32>
    %9 = tpu.matmul %7, %8, %cst_8 {dimension_numbers = #tpu.dot_dimension_numbers<[1], [0], [0], [1], [0, 0, 1, 1], [], []>} : vector<16x256xf32>, vector<256x128xf32>, vector<16x128xf32> -> vector<16x128xf32>
    %c0_9 = arith.constant 0 : index
    %c0_10 = arith.constant 0 : index
    %10 = vector.load %arg5[%c0_9, %c0_10] : memref<1x128xf32, #tpu.memory_space<vmem>>, vector<1x128xf32>
    %11 = vector.broadcast %10 : vector<1x128xf32> to vector<16x128xf32>
    %12 = arith.addf %9, %11 : vector<16x128xf32>
    %c0_11 = arith.constant 0 : index
    %c0_12 = arith.constant 0 : index
    %13 = vector.load %arg6[%c0_11, %c0_12] : memref<16x128xf32, #tpu.memory_space<vmem>>, vector<16x128xf32>
    tpu.vector_store %arg6[%c0_11, %c0_12], %12 {strides = array<i32>} : memref<16x128xf32, #tpu.memory_space<vmem>>, vector<16x128xf32>,
    return
  }
  func.func @transform_0(%arg0: i32) -> (i32, i32) {
    %c0_i32 = arith.constant 0 : i32
    %c0_i32_0 = arith.constant 0 : i32
    return %arg0, %c0_i32 : i32, i32
  }
  func.func @transform_1(%arg0: i32) -> (i32, i32) {
    %c0_i32 = arith.constant 0 : i32
    %c0_i32_0 = arith.constant 0 : i32
    %c0_i32_1 = arith.constant 0 : i32
    return %c0_i32, %c0_i32_0 : i32, i32
  }
  func.func @transform_2(%arg0: i32) -> (i32, i32) {
    %c0_i32 = arith.constant 0 : i32
    %c0_i32_0 = arith.constant 0 : i32
    %c0_i32_1 = arith.constant 0 : i32
    return %c0_i32, %c0_i32_0 : i32, i32
  }
  func.func @transform_3(%arg0: i32) -> (i32, i32) {
    %c0_i32 = arith.constant 0 : i32
    %c0_i32_0 = arith.constant 0 : i32
    %c0_i32_1 = arith.constant 0 : i32
    return %c0_i32, %c0_i32_0 : i32, i32
  }
  func.func @transform_4(%arg0: i32) -> (i32, i32) {
    %c0_i32 = arith.constant 0 : i32
    %c0_i32_0 = arith.constant 0 : i32
    %c0_i32_1 = arith.constant 0 : i32
    return %c0_i32, %c0_i32_0 : i32, i32
  }
  func.func @transform_5(%arg0: i32) -> (i32, i32) {
    %c0_i32 = arith.constant 0 : i32
    %c0_i32_0 = arith.constant 0 : i32
    return %arg0, %c0_i32 : i32, i32
  }
}

</mosaic_0001>

<llo_original>
// kernel: dqn_forward_cartpole.1
$region0: #{dqn_forward_cartpole.1}
  #allocation0 [shape = 'u32[]', space=smem, size = 0x4, offset = 0x4, fixed_abs, tag = 'smem constant byte address 0x4 - core index']
  #allocation1 [shape = 'u32[144,128]{1,0:T(1,128)}', space=vmem, size = 0x12000, scoped, tag = 'internal scratch']
  %s0 = inlined_call_operand.vmem [shape: f32[16,8], index: 0, kind: input, shape index: {}]
  %s1 = inlined_call_operand.vmem [shape: f32[8,256], index: 1, kind: input, shape index: {}]
  %s2 = inlined_call_operand.vmem [shape: f32[1,256], index: 2, kind: input, shape index: {}]
  %s3 = inlined_call_operand.hbm [shape: f32[256,128], index: 3, kind: input, shape index: {}]
  %s4 = inlined_call_operand.vmem [shape: f32[1,128], index: 4, kind: input, shape index: {}]
  %s5 = inlined_call_operand.vmem [shape: f32[16,128], index: 5, kind: output, shape index: {}]
  %s6 = sld [smem:[#allocation0]]
  $region34: #{dqn_forward_cartpole.1} parent=0
    _
  %s8 = ssub.s32 1, %s6
  %s9 = scalar_select 0, %s8, %s6
  $region1: #{dqn_forward_cartpole.1} parent=0
    #allocation2 [shape = 'u8[131072]{0}', space=vmem, size = 0x20000, scoped, tag = 'input window, operand 3, single buffered']
    #allocation3 [shape = 's32[1]{0}', space=sflag, size = 0x4, scoped, tag = 'scoped memory for dqn_forward_cartpole.1']
    %10 = vsyncpa [#allocation3], 0
    // Predicated region
    $region2: #{dqn_forward_cartpole.1} parent=1 // pred_check
      _
    $region3: #{dqn_forward_cartpole.1} parent=1 // pred_check_branch
      %12 = sbr.rel (0) target = $region5
    $region4: #{dqn_forward_cartpole.1} parent=1 // pred_region
      _
    $region5: #{dqn_forward_cartpole.1} parent=1 // pred_fallthru
      _
    // Predicated region
    $region6: #{dqn_forward_cartpole.1} parent=1 // pred_check
      _
    $region7: #{dqn_forward_cartpole.1} parent=1 // pred_check_branch
      %14 = sbr.rel (0) target = $region9
    $region8: #{dqn_forward_cartpole.1} parent=1 // pred_region
      _
    $region9: #{dqn_forward_cartpole.1} parent=1 // pred_fallthru
      _
    // Predicated region
    $region10: #{dqn_forward_cartpole.1} parent=1 // pred_check
      _
    $region11: #{dqn_forward_cartpole.1} parent=1 // pred_check_branch
      %16 = sbr.rel (0) target = $region13
    $region12: #{dqn_forward_cartpole.1} parent=1 // pred_region
      _
    $region13: #{dqn_forward_cartpole.1} parent=1 // pred_fallthru
      _
    // Predicated region
    $region14: #{dqn_forward_cartpole.1} parent=1 // pred_check
      _
    $region15: #{dqn_forward_cartpole.1} parent=1 // pred_check_branch
      %18 = sbr.rel (0) target = $region17
    $region16: #{dqn_forward_cartpole.1} parent=1 // pred_region
      %s20 = ssub.s32 4096, 4096
      %21 = vsyncadd [#allocation3], %s20
      %s22 = sshll.u32 [#allocation2], 4
      %s23 = int_to_ptr.vmem [resolvable:$true] %s22
      %28 = dma.hbm_to_vmem [thread:$0]  %s3, 4096, %s23, [#allocation3], 128, 128, 8
    $region17: #{dqn_forward_cartpole.1} parent=1 // pred_fallthru
      _
    // Predicated region
    $region18: #{dqn_forward_cartpole.1} parent=1 // pred_check
      _
    $region19: #{dqn_forward_cartpole.1} parent=1 // pred_check_branch
      %30 = sbr.rel (0) target = $region21
    $region20: #{dqn_forward_cartpole.1} parent=1 // pred_region
      _
    $region21: #{dqn_forward_cartpole.1} parent=1 // pred_fallthru
      _
    // Predicated region
    $region22: #{dqn_forward_cartpole.1} parent=1 // pred_check
      _
    $region23: #{dqn_forward_cartpole.1} parent=1 // pred_check_branch
      %32 = sbr.rel (0) target = $region25
    $region24: #{dqn_forward_cartpole.1} parent=1 // pred_region
      %33 = dma.done [#allocation3], 4096
    $region25: #{dqn_forward_cartpole.1} parent=1 // pred_fallthru
      _
    %v34 = vld [vmem:[%s0] sm:$0xff]
    %v35 = vld [vmem:[%s0 + $0x8] sm:$0xff]
    %v36 = vld [vmem:[%s1] sm:$0xff]
    %v37 = vld [vmem:[%s1 + $0x8] sm:$0xff]
    %v38 = vld [vmem:[%s2] sm:$0x3]
    %v40 = vlaneseq
    %v41 = vshrl.u32 %v40, 7
    %v42 = vsub.s32 0, %v41
    %v43 = vrot.slane %v38, %v42
    %v44 = vlaneseq
    %v45 = vshrl.u32 %v44, 7
    %v46 = vsub.s32 1, %v45
    %v47 = vrot.slane %v38, %v46
    %vm50 = vcmask 64512
    %v52 = vsel %vm50, %v34, 0
    %v55 = vsel %vm50, %v35, 0
    %57 = vmatprep.subr.mxu0 0.0
    %58 = vmatpush1.msra.mxu0 0.0
    %59 = vmatprep.subr.mxu0 0.0
    %60 = vmatpush1.msra.mxu0 0.0
    %61 = vmatprep.subr.mxu0 0.0
    %62 = vmatpush1.msra.mxu0 0.0
    %63 = vmatprep.subr.mxu0 0.0
    %64 = vmatpush1.msra.mxu0 0.0
    %65 = vmatprep.subr.mxu0 0.0
    %66 = vmatpush1.msra.mxu0 0.0
    %67 = vmatprep.subr.mxu0 0.0
    %68 = vmatpush1.msra.mxu0 0.0
    %69 = vmatprep.subr.mxu0 0.0
    %70 = vmatpush1.msra.mxu0 0.0
    %71 = vmatprep.subr.mxu0 0.0
    %72 = vmatpush1.msra.mxu0 0.0
    %73 = vmatprep.subr.mxu0 0.0
    %74 = vmatpush1.msra.mxu0 0.0
    %75 = vmatprep.subr.mxu0 0.0
    %76 = vmatpush1.msra.mxu0 0.0
    %77 = vmatprep.subr.mxu0 0.0
    %78 = vmatpush1.msra.mxu0 0.0
    %79 = vmatprep.subr.mxu0 0.0
    %80 = vmatpush1.msra.mxu0 0.0
    %81 = vmatprep.subr.mxu0 0.0
    %82 = vmatpush1.msra.mxu0 0.0
    %83 = vmatprep.subr.mxu0 0.0
    %84 = vmatpush1.msra.mxu0 0.0
    %85 = vmatprep.subr.mxu0 0.0
    %86 = vmatpush1.msra.mxu0 0.0
    %87 = vmatprep.subr.mxu0 %v37
    %88 = vmatpush1.msra.mxu0 %v36
    %89 = vmatprep.subr.mxu0 0.0
    %90 = vmatpush2.msra.mxu0 0.0
    %91 = vmatprep.subr.mxu0 0.0
    %92 = vmatpush2.msra.mxu0 0.0
    %93 = vmatprep.subr.mxu0 0.0
    %94 = vmatpush2.msra.mxu0 0.0
    %95 = vmatprep.subr.mxu0 0.0
    %96 = vmatpush2.msra.mxu0 0.0
    %97 = vmatprep.subr.mxu0 0.0
    %98 = vmatpush2.msra.mxu0 0.0
    %99 = vmatprep.subr.mxu0 0.0
    %100 = vmatpush2.msra.mxu0 0.0
    %101 = vmatprep.subr.mxu0 0.0
    %102 = vmatpush2.msra.mxu0 0.0
    %103 = vmatprep.subr.mxu0 0.0
    %104 = vmatpush2.msra.mxu0 0.0
    %105 = vmatprep.subr.mxu0 0.0
    %106 = vmatpush2.msra.mxu0 0.0
    %107 = vmatprep.subr.mxu0 0.0
    %108 = vmatpush2.msra.mxu0 0.0
    %109 = vmatprep.subr.mxu0 0.0
    %110 = vmatpush2.msra.mxu0 0.0
    %111 = vmatprep.subr.mxu0 0.0
    %112 = vmatpush2.msra.mxu0 0.0
    %113 = vmatprep.subr.mxu0 0.0
    %114 = vmatpush2.msra.mxu0 0.0
    %115 = vmatprep.subr.mxu0 0.0
    %116 = vmatpush2.msra.mxu0 0.0
    %117 = vmatprep.subr.mxu0 0.0
    %118 = vmatpush2.msra.mxu0 0.0
    %119 = vmatprep.subr.mxu0 0.0
    %120 = vmatpush2.msra.mxu0 0.0
    %121 = vmatprep.mubr.f32.mxu0 0.0
    %122 = vmatmul.mubr.f32.gmra.mxu0 %v52
    %v123 = vpop.f32.mrf.mxu0
    %v124 = vadd.f32 %v43, %v123
    %v125 = vpop.f32.mrf.mxu0
    %v126 = vadd.f32 %v47, %v125
    %127 = vmatprep.mubr.f32.mxu0 0.0
    %128 = vmatmul.mubr.f32.gmra.mxu0 %v55
    %v129 = vpop.f32.mrf.mxu0
    %v130 = vadd.f32 %v43, %v129
    %v131 = vpop.f32.mrf.mxu0
    %v132 = vadd.f32 %v47, %v131
    %133 = vdwg.mxu0
    %v134 = vmax.f32 %v124, 0.0
    %v135 = vmax.f32 %v126, 0.0
    %v136 = vmax.f32 %v130, 0.0
    %v137 = vmax.f32 %v132, 0.0
    %v138 = vld [vmem:[#allocation2] sm:$0xff]
    %v139 = vld [vmem:[#allocation2 + $0x8] sm:$0xff]
    %v140 = vld [vmem:[#allocation2 + $0x10] sm:$0xff]
    %v141 = vld [vmem:[#allocation2 + $0x18] sm:$0xff]
    %v142 = vld [vmem:[#allocation2 + $0x20] sm:$0xff]
    %v143 = vld [vmem:[#allocation2 + $0x28] sm:$0xff]
    %v144 = vld [vmem:[#allocation2 + $0x30] sm:$0xff]
    %v145 = vld [vmem:[#allocation2 + $0x38] sm:$0xff]
    %v146 = vld [vmem:[#allocation2 + $0x40] sm:$0xff]
    %v147 = vld [vmem:[#allocation2 + $0x48] sm:$0xff]
    %v148 = vld [vmem:[#allocation2 + $0x50] sm:$0xff]
    %v149 = vld [vmem:[#allocation2 + $0x58] sm:$0xff]
    %v150 = vld [vmem:[#allocation2 + $0x60] sm:$0xff]
    %v151 = vld [vmem:[#allocation2 + $0x68] sm:$0xff]
    %v152 = vld [vmem:[#allocation2 + $0x70] sm:$0xff]
    %v153 = vld [vmem:[#allocation2 + $0x78] sm:$0xff]
    %v154 = vld [vmem:[#allocation2 + $0x80] sm:$0xff]
    %v155 = vld [vmem:[#allocation2 + $0x88] sm:$0xff]
    %v156 = vld [vmem:[#allocation2 + $0x90] sm:$0xff]
    %v157 = vld [vmem:[#allocation2 + $0x98] sm:$0xff]
    %v158 = vld [vmem:[#allocation2 + $0xa0] sm:$0xff]
    %v159 = vld [vmem:[#allocation2 + $0xa8] sm:$0xff]
    %v160 = vld [vmem:[#allocation2 + $0xb0] sm:$0xff]
    %v161 = vld [vmem:[#allocation2 + $0xb8] sm:$0xff]
    %v162 = vld [vmem:[#allocation2 + $0xc0] sm:$0xff]
    %v163 = vld [vmem:[#allocation2 + $0xc8] sm:$0xff]
    %v164 = vld [vmem:[#allocation2 + $0xd0] sm:$0xff]
    %v165 = vld [vmem:[#allocation2 + $0xd8] sm:$0xff]
    %v166 = vld [vmem:[#allocation2 + $0xe0] sm:$0xff]
    %v167 = vld [vmem:[#allocation2 + $0xe8] sm:$0xff]
    %v168 = vld [vmem:[#allocation2 + $0xf0] sm:$0xff]
    %v169 = vld [vmem:[#allocation2 + $0xf8] sm:$0xff]
    %v170 = vld [vmem:[%s4] sm:$0x1]
    %v172 = vlaneseq
    %v173 = vshrl.u32 %v172, 7
    %v174 = vsub.s32 0, %v173
    %v175 = vrot.slane %v170, %v174
    %177 = vmatprep.subr.mxu0 0.0
    %178 = vmatpush1.msra.mxu0 %v153
    %179 = vmatprep.subr.mxu0 0.0
    %180 = vmatpush1.msra.mxu0 %v152
    %181 = vmatprep.subr.mxu0 0.0
    %182 = vmatpush1.msra.mxu0 %v151
    %183 = vmatprep.subr.mxu0 0.0
    %184 = vmatpush1.msra.mxu0 %v150
    %185 = vmatprep.subr.mxu0 0.0
    %186 = vmatpush1.msra.mxu0 %v149
    %187 = vmatprep.subr.mxu0 0.0
    %188 = vmatpush1.msra.mxu0 %v148
    %189 = vmatprep.subr.mxu0 0.0
    %190 = vmatpush1.msra.mxu0 %v147
    %191 = vmatprep.subr.mxu0 0.0
    %192 = vmatpush1.msra.mxu0 %v146
    %193 = vmatprep.subr.mxu0 0.0
    %194 = vmatpush1.msra.mxu0 %v145
    %195 = vmatprep.subr.mxu0 0.0
    %196 = vmatpush1.msra.mxu0 %v144
    %197 = vmatprep.subr.mxu0 0.0
    %198 = vmatpush1.msra.mxu0 %v143
    %199 = vmatprep.subr.mxu0 0.0
    %200 = vmatpush1.msra.mxu0 %v142
    %201 = vmatprep.subr.mxu0 0.0
    %202 = vmatpush1.msra.mxu0 %v141
    %203 = vmatprep.subr.mxu0 0.0
    %204 = vmatpush1.msra.mxu0 %v140
    %205 = vmatprep.subr.mxu0 0.0
    %206 = vmatpush1.msra.mxu0 %v139
    %207 = vmatprep.subr.mxu0 0.0
    %208 = vmatpush1.msra.mxu0 %v138
    %209 = vmatprep.subr.mxu0 0.0
    %210 = vmatpush2.msra.mxu0 %v169
    %211 = vmatprep.subr.mxu0 0.0
    %212 = vmatpush2.msra.mxu0 %v168
    %213 = vmatprep.subr.mxu0 0.0
    %214 = vmatpush2.msra.mxu0 %v167
    %215 = vmatprep.subr.mxu0 0.0
    %216 = vmatpush2.msra.mxu0 %v166
    %217 = vmatprep.subr.mxu0 0.0
    %218 = vmatpush2.msra.mxu0 %v165
    %219 = vmatprep.subr.mxu0 0.0
    %220 = vmatpush2.msra.mxu0 %v164
    %221 = vmatprep.subr.mxu0 0.0
    %222 = vmatpush2.msra.mxu0 %v163
    %223 = vmatprep.subr.mxu0 0.0
    %224 = vmatpush2.msra.mxu0 %v162
    %225 = vmatprep.subr.mxu0 0.0
    %226 = vmatpush2.msra.mxu0 %v161
    %227 = vmatprep.subr.mxu0 0.0
    %228 = vmatpush2.msra.mxu0 %v160
    %229 = vmatprep.subr.mxu0 0.0
    %230 = vmatpush2.msra.mxu0 %v159
    %231 = vmatprep.subr.mxu0 0.0
    %232 = vmatpush2.msra.mxu0 %v158
    %233 = vmatprep.subr.mxu0 0.0
    %234 = vmatpush2.msra.mxu0 %v157
    %235 = vmatprep.subr.mxu0 0.0
    %236 = vmatpush2.msra.mxu0 %v156
    %237 = vmatprep.subr.mxu0 0.0
    %238 = vmatpush2.msra.mxu0 %v155
    %239 = vmatprep.subr.mxu0 0.0
    %240 = vmatpush2.msra.mxu0 %v154
    %241 = vmatprep.mubr.f32.mxu0 %v135
    %242 = vmatmul.mubr.f32.gmra.mxu0 %v134
    %v243 = vpop.f32.mrf.mxu0
    %v244 = vadd.f32 %v175, %v243
    %v245 = vpop.f32.mrf.mxu0
    %246 = vmatprep.mubr.f32.mxu0 %v137
    %247 = vmatmul.mubr.f32.gmra.mxu0 %v136
    %v248 = vpop.f32.mrf.mxu0
    %v249 = vadd.f32 %v175, %v248
    %v250 = vpop.f32.mrf.mxu0
    %251 = vdwg.mxu0
    %252 = vst [vmem:[%s5] sm:$0xff] %v244
    %253 = vst [vmem:[%s5 + $0x8] sm:$0xff] %v249
    // Predicated region
    $region26: #{dqn_forward_cartpole.1} parent=1 // pred_check
      _
    $region27: #{dqn_forward_cartpole.1} parent=1 // pred_check_branch
      %255 = sbr.rel (0) target = $region29
    $region28: #{dqn_forward_cartpole.1} parent=1 // pred_region
      _
    $region29: #{dqn_forward_cartpole.1} parent=1 // pred_fallthru
      _
    // Predicated region
    $region30: #{dqn_forward_cartpole.1} parent=1 // pred_check
      _
    $region31: #{dqn_forward_cartpole.1} parent=1 // pred_check_branch
      %257 = sbr.rel (0) target = $region33
    $region32: #{dqn_forward_cartpole.1} parent=1 // pred_region
      _
    $region33: #{dqn_forward_cartpole.1} parent=1 // pred_fallthru
      _
    %258 = vsyncpa [#allocation3], 1

</llo_original>
